<compile_context>
chip_gen: v7x
topology: tpu7x:2x2x1
jax: 0.10.0
libtpu: 0.0.40
codegen_flags: <defaults>
</compile_context>

<pallas_src>
import functools

import jax
import jax.numpy as jnp
from jax.experimental import pallas as pl
from jax.experimental.pallas import tpu as pltpu


def _round_up(n, m):
    return ((n + m - 1) // m) * m


def _mlp_kernel(xt_ref, w1_ref, b1_ref, w2_ref, b2_ref, ot_ref):
    # Feature-major layout: batch on the lane (last) axis.
    #   xt: [in, TB]      w1: [hidden, in]    b1: [hidden, 1]
    #   w2: [out, hidden] b2: [out, 1]        ot: [out, TB]
    xt = xt_ref[...]
    # Layer 1 on the MXU, f32 accumulate; bias + ReLU in f32 on the VPU
    # (lane-broadcast of the [hidden, 1] bias).
    h = jnp.dot(w1_ref[...], xt, preferred_element_type=jnp.float32)
    h = jnp.maximum(h + b1_ref[...].astype(jnp.float32), 0.0)
    # Keep h in f32; upcast the tiny [out, hidden] w2 instead (better numerics,
    # same speed -- the kernel is HBM-bound, not MXU-bound).
    o = jnp.dot(w2_ref[...].astype(jnp.float32), h,
                preferred_element_type=jnp.float32)
    o = o + b2_ref[...].astype(jnp.float32)
    ot_ref[...] = o.astype(ot_ref.dtype)


def _choose_batch_tiling(B, itemsize, max_block_rows=None):
    """Pick (tile_rows, padded_B, n_steps) for the lane (batch) axis."""
    if max_block_rows is None:
        # ~16 MiB of double-buffered in+out activation tiles:
        #   2 buffers * (8 + 8 sublane-padded rows) * tb * itemsize.
        max_block_rows = (16 << 20) // (32 * itemsize)
    max_block_rows = max(128, _round_up(max_block_rows, 128))
    # Per-step DMA should stay >= ~2 MiB; only split for megacore if there is
    # enough work for both TensorCores.
    min_split_rows = max(128, (2 << 20) // (16 * itemsize))

    n = pl.cdiv(B, max_block_rows)
    if n < 2 and B >= 2 * min_split_rows:
        n = 2                      # give both v7x TensorCores a grid step
    n = max(n, 1)

    b_pad = _round_up(B, 128 * n)  # padding bounded by ~n*128 rows
    tb = b_pad // n
    return tb, b_pad, n


def simple_nn_forward_fm(xt, w1, b1, w2, b2, *, max_block_rows=None):
    """Feature-major SimpleNN forward (the optimized external contract).

    xt: [in_features, B]   (batch on the lane axis)
    w1: [hidden, in_features],  b1: [hidden]      (torch nn.Linear orientation)
    w2: [out_features, hidden], b2: [out_features]
    returns [out_features, B]
    """
    in_f, B = xt.shape
    hidden = w1.shape[0]
    out_f = w2.shape[0]
    itemsize = jnp.dtype(xt.dtype).itemsize

    tb, b_pad, n_steps = _choose_batch_tiling(B, itemsize, max_block_rows)
    if b_pad != B:
        # Small pad (bounded by ~n_steps*128 rows); unavoidable copy only when
        # B is not already a multiple of the tile.
        xt = jnp.pad(xt, ((0, 0), (0, b_pad - B)))

    b1c = b1.reshape(hidden, 1)
    b2c = b2.reshape(out_f, 1)

    flops = 2 * b_pad * (in_f * hidden + hidden * out_f)
    bytes_accessed = int(
        in_f * b_pad * itemsize + out_f * b_pad * itemsize
        + w1.size * jnp.dtype(w1.dtype).itemsize
        + w2.size * jnp.dtype(w2.dtype).itemsize
        + b1.size * jnp.dtype(b1.dtype).itemsize
        + b2.size * jnp.dtype(b2.dtype).itemsize)

    # Double-buffered in/out activation tiles (sublane-padded 7->8, 4->8) plus
    # headroom for the (tiny) weights.  Explicit limit so v5e's 16 MiB default
    # scoped VMEM doesn't throttle large tiles; capped well under v7x's 64 MiB.
    in_rows = _round_up(in_f, 8)
    out_rows = _round_up(out_f, 8)
    act_bytes = 2 * (in_rows + out_rows) * tb * itemsize
    vmem_limit = int(min(56 << 20, max(32 << 20, act_bytes + (8 << 20))))

    ot = pl.pallas_call(
        _mlp_kernel,
        out_shape=jax.ShapeDtypeStruct((out_f, b_pad), xt.dtype),
        grid=(n_steps,),
        in_specs=[
            pl.BlockSpec((in_f, tb), lambda i: (0, i)),      # activations stream by batch tile
            pl.BlockSpec((hidden, in_f), lambda i: (0, 0)),  # weights/biases: constant index_map,
            pl.BlockSpec((hidden, 1), lambda i: (0, 0)),     # DMA'd once, VMEM-resident
            pl.BlockSpec((out_f, hidden), lambda i: (0, 0)),
            pl.BlockSpec((out_f, 1), lambda i: (0, 0)),
        ],
        out_specs=pl.BlockSpec((out_f, tb), lambda i: (0, i)),
        compiler_params=pltpu.CompilerParams(
            dimension_semantics=("parallel",),   # batch axis shards over v7x's 2 TCs
            vmem_limit_bytes=vmem_limit,
        ),
        cost_estimate=pl.CostEstimate(
            flops=flops, transcendentals=0, bytes_accessed=bytes_accessed),
    )(xt, w1, b1c, w2, b2c)

    if b_pad != B:
        # Padded batch columns hold relu(b1) @ w2.T + b2 (nonzero) -- drop them.
        ot = ot[:, :B]
    return ot


def simple_nn_forward(x, w1, b1, w2, b2, *, max_block_rows=None):
    """Torch-layout compatibility wrapper: x [B, in] -> [B, out].

    Prefer simple_nn_forward_fm for large batches: this wrapper's transposes
    are layout plumbing that the feature-major contract avoids.
    """
    out_t = simple_nn_forward_fm(x.T, w1, b1, w2, b2,
                                 max_block_rows=max_block_rows)
    return out_t.T


def init_params(key, input_size=7, hidden=16, output_size=4, dtype=jnp.float32):
    """PyTorch-default-style init (uniform +/- 1/sqrt(fan_in)), torch [out, in] layout."""
    k1, k2, k3, k4 = jax.random.split(key, 4)
    bound1 = 1.0 / (input_size ** 0.5)
    bound2 = 1.0 / (hidden ** 0.5)
    w1 = jax.random.uniform(k1, (hidden, input_size), dtype, -bound1, bound1)
    b1 = jax.random.uniform(k2, (hidden,), dtype, -bound1, bound1)
    w2 = jax.random.uniform(k3, (output_size, hidden), dtype, -bound2, bound2)
    b2 = jax.random.uniform(k4, (output_size,), dtype, -bound2, bound2)
    return w1, b1, w2, b2


def _ref_forward(x, w1, b1, w2, b2):
    return jnp.maximum(x @ w1.T + b1, 0.0) @ w2.T + b2


if __name__ == "__main__":
    key = jax.random.PRNGKey(0)
    kx, kp, kx2, kx3 = jax.random.split(key, 4)

    B, input_size, hidden, output_size = 8, 7, 4, 4
    input_size, hidden, output_size = 7, 16, 4
    x = jax.random.normal(kx, (B, input_size), jnp.float32)
    w1, b1, w2, b2 = init_params(kp, input_size, hidden, output_size)

    # 1) Torch-layout small-batch path (single 128-row tile, grid=(1,)).
    out = jax.block_until_ready(simple_nn_forward(x, w1, b1, w2, b2))
    ref = _ref_forward(x, w1, b1, w2, b2)
    assert out.shape == (B, output_size)
    assert jnp.allclose(out, ref, atol=1e-5, rtol=1e-5)

    # 2) Feature-major (optimized contract), multi-step grid: B=2048 with a
    #    512-row tile cap -> tb=512, grid=(4,).
    B2 = 2048
    x2 = jax.random.normal(kx2, (input_size, B2), jnp.float32)   # [in, B]
    out2 = jax.block_until_ready(
        simple_nn_forward_fm(x2, w1, b1, w2, b2, max_block_rows=512))
    ref2 = _ref_forward(x2.T, w1, b1, w2, b2).T                  # [out, B]
    assert out2.shape == (output_size, B2)
    assert jnp.allclose(out2, ref2, atol=1e-5, rtol=1e-5)

    # 3) Feature-major bf16 storage (halved HBM traffic), ragged B=1000
    #    (pads to 1024, tb=256, grid=(4,), result sliced back to 1000).
    B3 = 1000
    x3 = jax.random.normal(kx3, (input_size, B3), jnp.float32)
    out3 = jax.block_until_ready(
        simple_nn_forward_fm(x3.astype(jnp.bfloat16),
                             w1.astype(jnp.bfloat16), b1,
                             w2.astype(jnp.bfloat16), b2,
                             max_block_rows=256))
    ref3 = _ref_forward(x3.T, w1, b1, w2, b2).T
    assert out3.shape == (output_size, B3)
    assert jnp.allclose(out3.astype(jnp.float32), ref3, atol=1e-1, rtol=1e-1)

    print("KERNEL_OK")
</pallas_src>

<mosaic_0001>
module attributes {stable_mosaic.version = 11 : i64} {
  func.func @_mlp_kernel(%arg0: i32, %arg1: memref<7x128xf32, #tpu.memory_space<vmem>>, %arg2: memref<16x7xf32, #tpu.memory_space<vmem>>, %arg3: memref<16x1xf32, #tpu.memory_space<vmem>>, %arg4: memref<4x16xf32, #tpu.memory_space<vmem>>, %arg5: memref<4x1xf32, #tpu.memory_space<vmem>>, %arg6: memref<4x128xf32, #tpu.memory_space<vmem>>) attributes {dimension_semantics = [#tpu.dimension_semantics<parallel>], iteration_bounds = array<i64: 1>, scalar_prefetch = 0 : i64, scratch_operands = 0 : i64, tpu.core_type = #tpu.core_type<tc>, window_params = [{transform_indices = @transform_0, window_bounds = array<i64: 7, 128>}, {pipeline_mode = #tpu.pipeline_mode<synchronous>, transform_indices = @transform_1, window_bounds = array<i64: 16, 7>}, {pipeline_mode = #tpu.pipeline_mode<synchronous>, transform_indices = @transform_2, window_bounds = array<i64: 16, 1>}, {pipeline_mode = #tpu.pipeline_mode<synchronous>, transform_indices = @transform_3, window_bounds = array<i64: 4, 16>}, {pipeline_mode = #tpu.pipeline_mode<synchronous>, transform_indices = @transform_4, window_bounds = array<i64: 4, 1>}, {transform_indices = @transform_5, window_bounds = array<i64: 4, 128>}]} {
    %c0 = arith.constant 0 : index
    %c0_0 = arith.constant 0 : index
    %0 = vector.load %arg1[%c0, %c0_0] : memref<7x128xf32, #tpu.memory_space<vmem>>, vector<7x128xf32>
    %c0_1 = arith.constant 0 : index
    %c0_2 = arith.constant 0 : index
    %1 = vector.load %arg2[%c0_1, %c0_2] : memref<16x7xf32, #tpu.memory_space<vmem>>, vector<16x7xf32>
    %cst = arith.constant dense<0.000000e+00> : vector<16x128xf32>
    %2 = tpu.matmul %1, %0, %cst {dimension_numbers = #tpu.dot_dimension_numbers<[1], [0], [0], [1], [0, 0, 1, 1], [], []>} : vector<16x7xf32>, vector<7x128xf32>, vector<16x128xf32> -> vector<16x128xf32>
    %c0_3 = arith.constant 0 : index
    %c0_4 = arith.constant 0 : index
    %3 = vector.load %arg3[%c0_3, %c0_4] : memref<16x1xf32, #tpu.memory_space<vmem>>, vector<16x1xf32>
    %4 = vector.broadcast %3 : vector<16x1xf32> to vector<16x128xf32>
    %5 = arith.addf %2, %4 : vector<16x128xf32>
    %cst_5 = arith.constant 0.000000e+00 : f32
    %6 = vector.broadcast %cst_5 : f32 to vector<16x128xf32>
    %7 = arith.maximumf %5, %6 : vector<16x128xf32>
    %c0_6 = arith.constant 0 : index
    %c0_7 = arith.constant 0 : index
    %8 = vector.load %arg4[%c0_6, %c0_7] : memref<4x16xf32, #tpu.memory_space<vmem>>, vector<4x16xf32>
    %cst_8 = arith.constant dense<0.000000e+00> : vector<4x128xf32>
    %9 = tpu.matmul %8, %7, %cst_8 {dimension_numbers = #tpu.dot_dimension_numbers<[1], [0], [0], [1], [0, 0, 1, 1], [], []>} : vector<4x16xf32>, vector<16x128xf32>, vector<4x128xf32> -> vector<4x128xf32>
    %c0_9 = arith.constant 0 : index
    %c0_10 = arith.constant 0 : index
    %10 = vector.load %arg5[%c0_9, %c0_10] : memref<4x1xf32, #tpu.memory_space<vmem>>, vector<4x1xf32>
    %11 = vector.broadcast %10 : vector<4x1xf32> to vector<4x128xf32>
    %12 = arith.addf %9, %11 : vector<4x128xf32>
    %c0_11 = arith.constant 0 : index
    %c0_12 = arith.constant 0 : index
    %13 = vector.load %arg6[%c0_11, %c0_12] : memref<4x128xf32, #tpu.memory_space<vmem>>, vector<4x128xf32>
    tpu.vector_store %arg6[%c0_11, %c0_12], %12 {strides = array<i32>} : memref<4x128xf32, #tpu.memory_space<vmem>>, vector<4x128xf32>,
    return
  }
  func.func @transform_0(%arg0: i32) -> (i32, i32) {
    %c0_i32 = arith.constant 0 : i32
    %c0_i32_0 = arith.constant 0 : i32
    return %c0_i32, %arg0 : i32, i32
  }
  func.func @transform_1(%arg0: i32) -> (i32, i32) {
    %c0_i32 = arith.constant 0 : i32
    %c0_i32_0 = arith.constant 0 : i32
    %c0_i32_1 = arith.constant 0 : i32
    return %c0_i32, %c0_i32_0 : i32, i32
  }
  func.func @transform_2(%arg0: i32) -> (i32, i32) {
    %c0_i32 = arith.constant 0 : i32
    %c0_i32_0 = arith.constant 0 : i32
    %c0_i32_1 = arith.constant 0 : i32
    return %c0_i32, %c0_i32_0 : i32, i32
  }
  func.func @transform_3(%arg0: i32) -> (i32, i32) {
    %c0_i32 = arith.constant 0 : i32
    %c0_i32_0 = arith.constant 0 : i32
    %c0_i32_1 = arith.constant 0 : i32
    return %c0_i32, %c0_i32_0 : i32, i32
  }
  func.func @transform_4(%arg0: i32) -> (i32, i32) {
    %c0_i32 = arith.constant 0 : i32
    %c0_i32_0 = arith.constant 0 : i32
    %c0_i32_1 = arith.constant 0 : i32
    return %c0_i32, %c0_i32_0 : i32, i32
  }
  func.func @transform_5(%arg0: i32) -> (i32, i32) {
    %c0_i32 = arith.constant 0 : i32
    %c0_i32_0 = arith.constant 0 : i32
    return %c0_i32, %arg0 : i32, i32
  }
}

</mosaic_0001>

<llo_original>
// kernel: tpu_custom_call.1
$region0: #{tpu_custom_call.1}
  #allocation0 [shape = 'u32[]', space=smem, size = 0x4, offset = 0x4, fixed_abs, tag = 'smem constant byte address 0x4 - core index']
  #allocation1 [shape = 'u32[144,128]{1,0:T(1,128)}', space=vmem, size = 0x12000, scoped, tag = 'internal scratch']
  %s0 = inlined_call_operand.vmem [shape: f32[7,128], index: 0, kind: input, shape index: {}]
  %s1 = inlined_call_operand.vmem [shape: f32[16,7], index: 1, kind: input, shape index: {}]
  %s2 = inlined_call_operand.vmem [shape: f32[16,1], index: 2, kind: input, shape index: {}]
  %s3 = inlined_call_operand.vmem [shape: f32[4,16], index: 3, kind: input, shape index: {}]
  %s4 = inlined_call_operand.vmem [shape: f32[4,1], index: 4, kind: input, shape index: {}]
  %s5 = inlined_call_operand.hbm [shape: f32[4,128], index: 5, kind: output, shape index: {}]
  %s6 = sld [smem:[#allocation0]]
  $region30: #{tpu_custom_call.1} parent=0
    _
  %s8 = ssub.s32 1, %s6
  %s9 = scalar_select 0, %s8, %s6
  $region1: #{tpu_custom_call.1} parent=0
    #allocation2 [shape = 'u8[2048]{0}', space=vmem, size = 0x800, scoped, tag = 'output window, operand 0, single buffered']
    #allocation3 [shape = 's32[1]{0}', space=sflag, size = 0x4, scoped, tag = 'scoped memory for tpu_custom_call.1']
    %10 = vsyncpa [#allocation3], 0
    // Predicated region
    $region2: #{tpu_custom_call.1} parent=1 // pred_check
      _
    $region3: #{tpu_custom_call.1} parent=1 // pred_check_branch
      %12 = sbr.rel (0) target = $region5
    $region4: #{tpu_custom_call.1} parent=1 // pred_region
      _
    $region5: #{tpu_custom_call.1} parent=1 // pred_fallthru
      _
    // Predicated region
    $region6: #{tpu_custom_call.1} parent=1 // pred_check
      _
    $region7: #{tpu_custom_call.1} parent=1 // pred_check_branch
      %14 = sbr.rel (0) target = $region9
    $region8: #{tpu_custom_call.1} parent=1 // pred_region
      _
    $region9: #{tpu_custom_call.1} parent=1 // pred_fallthru
      _
    // Predicated region
    $region10: #{tpu_custom_call.1} parent=1 // pred_check
      _
    $region11: #{tpu_custom_call.1} parent=1 // pred_check_branch
      %16 = sbr.rel (0) target = $region13
    $region12: #{tpu_custom_call.1} parent=1 // pred_region
      _
    $region13: #{tpu_custom_call.1} parent=1 // pred_fallthru
      _
    // Predicated region
    $region14: #{tpu_custom_call.1} parent=1 // pred_check
      _
    $region15: #{tpu_custom_call.1} parent=1 // pred_check_branch
      %18 = sbr.rel (0) target = $region17
    $region16: #{tpu_custom_call.1} parent=1 // pred_region
      _
    $region17: #{tpu_custom_call.1} parent=1 // pred_fallthru
      _
    // Predicated region
    $region18: #{tpu_custom_call.1} parent=1 // pred_check
      _
    $region19: #{tpu_custom_call.1} parent=1 // pred_check_branch
      %20 = sbr.rel (0) target = $region21
    $region20: #{tpu_custom_call.1} parent=1 // pred_region
      _
    $region21: #{tpu_custom_call.1} parent=1 // pred_fallthru
      _
    %v21 = vld [vmem:[%s0] sm:$0x7f]
    %v22 = vld [vmem:[%s1] sm:$0xff]
    %v23 = vld [vmem:[%s1 + $0x8] sm:$0xff]
    %v24 = vld [vmem:[%s2] sm:$0xff]
    %v25 = vld [vmem:[%s2 + $0x8] sm:$0xff]
    %27 = vset.pattern.permute.xlu0 0
    %28 = vperm.xlu0 %27, %v24
    %v29 = vpop.permute.xlu0 %28
    %32 = vset.pattern.permute.xlu0 0
    %33 = vperm.xlu0 %32, %v25
    %v34 = vpop.permute.xlu0 %33
    %vm36 = vcmask 56320
    %v38 = vsel %vm36, %v22, 0
    %v41 = vsel %vm36, %v23, 0
    %vm43 = vcmask 1046528
    %v45 = vsel %vm43, %v21, 0
    %47 = vmatprep.subr.mxu0 0.0
    %48 = vmatpush1.msra.mxu0 %v45
    %49 = vmatprep.subr.mxu0 0.0
    %50 = vmatpush1.msra.mxu0 0.0
    %51 = vmatprep.subr.mxu0 0.0
    %52 = vmatpush1.msra.mxu0 0.0
    %53 = vmatprep.subr.mxu0 0.0
    %54 = vmatpush1.msra.mxu0 0.0
    %55 = vmatprep.subr.mxu0 0.0
    %56 = vmatpush1.msra.mxu0 0.0
    %57 = vmatprep.subr.mxu0 0.0
    %58 = vmatpush1.msra.mxu0 0.0
    %59 = vmatprep.subr.mxu0 0.0
    %60 = vmatpush1.msra.mxu0 0.0
    %61 = vmatprep.subr.mxu0 0.0
    %62 = vmatpush1.msra.mxu0 0.0
    %63 = vmatprep.subr.mxu0 0.0
    %64 = vmatpush1.msra.mxu0 0.0
    %65 = vmatprep.subr.mxu0 0.0
    %66 = vmatpush1.msra.mxu0 0.0
    %67 = vmatprep.subr.mxu0 0.0
    %68 = vmatpush1.msra.mxu0 0.0
    %69 = vmatprep.subr.mxu0 0.0
    %70 = vmatpush1.msra.mxu0 0.0
    %71 = vmatprep.subr.mxu0 0.0
    %72 = vmatpush1.msra.mxu0 0.0
    %73 = vmatprep.subr.mxu0 0.0
    %74 = vmatpush1.msra.mxu0 0.0
    %75 = vmatprep.subr.mxu0 0.0
    %76 = vmatpush1.msra.mxu0 0.0
    %77 = vmatprep.subr.mxu0 0.0
    %78 = vmatpush1.msra.mxu0 0.0
    %79 = vmatprep.subr.mxu0 0.0
    %80 = vmatpush1.msra.mxu0 0.0
    %81 = vmatprep.subr.mxu0 0.0
    %82 = vmatpush1.msra.mxu0 0.0
    %83 = vmatprep.subr.mxu0 0.0
    %84 = vmatpush1.msra.mxu0 0.0
    %85 = vmatprep.subr.mxu0 0.0
    %86 = vmatpush1.msra.mxu0 0.0
    %87 = vmatprep.subr.mxu0 0.0
    %88 = vmatpush1.msra.mxu0 0.0
    %89 = vmatprep.subr.mxu0 0.0
    %90 = vmatpush1.msra.mxu0 0.0
    %91 = vmatprep.subr.mxu0 0.0
    %92 = vmatpush1.msra.mxu0 0.0
    %93 = vmatprep.subr.mxu0 0.0
    %94 = vmatpush1.msra.mxu0 0.0
    %95 = vmatprep.subr.mxu0 0.0
    %96 = vmatpush1.msra.mxu0 0.0
    %97 = vmatprep.subr.mxu0 0.0
    %98 = vmatpush1.msra.mxu0 0.0
    %99 = vmatprep.subr.mxu0 0.0
    %100 = vmatpush1.msra.mxu0 0.0
    %101 = vmatprep.subr.mxu0 0.0
    %102 = vmatpush1.msra.mxu0 0.0
    %103 = vmatprep.subr.mxu0 0.0
    %104 = vmatpush1.msra.mxu0 0.0
    %105 = vmatprep.subr.mxu0 0.0
    %106 = vmatpush1.msra.mxu0 0.0
    %107 = vmatprep.subr.mxu0 0.0
    %108 = vmatpush1.msra.mxu0 0.0
    %109 = vmatprep.subr.mxu0 0.0
    %110 = vmatpush1.msra.mxu0 0.0
    %111 = vmatprep.mubr.f32.mxu0 0.0
    %112 = vmatmul.mubr.f32.gmra.mrb[0].mxu0 %v38
    %v113 = vpop.f32.mrb[0].mxu0
    %v114 = vadd.f32 %v29, %v113
    %v115 = vpop.f32.mrb[0].mxu0
    %116 = vmatprep.mubr.f32.mxu0 0.0
    %117 = vmatmul.mubr.f32.gmra.mrb[0].mxu0 %v41
    %v118 = vpop.f32.mrb[0].mxu0
    %v119 = vadd.f32 %v34, %v118
    %v120 = vpop.f32.mrb[0].mxu0
    %121 = vdwg.mxu0
    %v122 = vmax.f32 %v114, 0.0
    %v123 = vmax.f32 %v119, 0.0
    %v124 = vld [vmem:[%s3] sm:$0xf]
    %v125 = vld [vmem:[%s4] sm:$0xf]
    %127 = vset.pattern.permute.xlu0 0
    %128 = vperm.xlu0 %127, %v125
    %v129 = vpop.permute.xlu0 %128
    %vm131 = vcmask 130048
    %v133 = vsel %vm131, %v124, 0
    %135 = vmatprep.subr.mxu0 0.0
    %136 = vmatpush1.msra.mxu0 %v122
    %137 = vmatprep.subr.mxu0 0.0
    %138 = vmatpush1.msra.mxu0 %v123
    %139 = vmatprep.subr.mxu0 0.0
    %140 = vmatpush1.msra.mxu0 0.0
    %141 = vmatprep.subr.mxu0 0.0
    %142 = vmatpush1.msra.mxu0 0.0
    %143 = vmatprep.subr.mxu0 0.0
    %144 = vmatpush1.msra.mxu0 0.0
    %145 = vmatprep.subr.mxu0 0.0
    %146 = vmatpush1.msra.mxu0 0.0
    %147 = vmatprep.subr.mxu0 0.0
    %148 = vmatpush1.msra.mxu0 0.0
    %149 = vmatprep.subr.mxu0 0.0
    %150 = vmatpush1.msra.mxu0 0.0
    %151 = vmatprep.subr.mxu0 0.0
    %152 = vmatpush1.msra.mxu0 0.0
    %153 = vmatprep.subr.mxu0 0.0
    %154 = vmatpush1.msra.mxu0 0.0
    %155 = vmatprep.subr.mxu0 0.0
    %156 = vmatpush1.msra.mxu0 0.0
    %157 = vmatprep.subr.mxu0 0.0
    %158 = vmatpush1.msra.mxu0 0.0
    %159 = vmatprep.subr.mxu0 0.0
    %160 = vmatpush1.msra.mxu0 0.0
    %161 = vmatprep.subr.mxu0 0.0
    %162 = vmatpush1.msra.mxu0 0.0
    %163 = vmatprep.subr.mxu0 0.0
    %164 = vmatpush1.msra.mxu0 0.0
    %165 = vmatprep.subr.mxu0 0.0
    %166 = vmatpush1.msra.mxu0 0.0
    %167 = vmatprep.subr.mxu0 0.0
    %168 = vmatpush1.msra.mxu0 0.0
    %169 = vmatprep.subr.mxu0 0.0
    %170 = vmatpush1.msra.mxu0 0.0
    %171 = vmatprep.subr.mxu0 0.0
    %172 = vmatpush1.msra.mxu0 0.0
    %173 = vmatprep.subr.mxu0 0.0
    %174 = vmatpush1.msra.mxu0 0.0
    %175 = vmatprep.subr.mxu0 0.0
    %176 = vmatpush1.msra.mxu0 0.0
    %177 = vmatprep.subr.mxu0 0.0
    %178 = vmatpush1.msra.mxu0 0.0
    %179 = vmatprep.subr.mxu0 0.0
    %180 = vmatpush1.msra.mxu0 0.0
    %181 = vmatprep.subr.mxu0 0.0
    %182 = vmatpush1.msra.mxu0 0.0
    %183 = vmatprep.subr.mxu0 0.0
    %184 = vmatpush1.msra.mxu0 0.0
    %185 = vmatprep.subr.mxu0 0.0
    %186 = vmatpush1.msra.mxu0 0.0
    %187 = vmatprep.subr.mxu0 0.0
    %188 = vmatpush1.msra.mxu0 0.0
    %189 = vmatprep.subr.mxu0 0.0
    %190 = vmatpush1.msra.mxu0 0.0
    %191 = vmatprep.subr.mxu0 0.0
    %192 = vmatpush1.msra.mxu0 0.0
    %193 = vmatprep.subr.mxu0 0.0
    %194 = vmatpush1.msra.mxu0 0.0
    %195 = vmatprep.subr.mxu0 0.0
    %196 = vmatpush1.msra.mxu0 0.0
    %197 = vmatprep.subr.mxu0 0.0
    %198 = vmatpush1.msra.mxu0 0.0
    %199 = vmatprep.mubr.f32.mxu0 0.0
    %200 = vmatmul.mubr.f32.gmra.mrb[0].mxu0 %v133
    %v201 = vpop.f32.mrb[0].mxu0
    %v202 = vadd.f32 %v129, %v201
    %v203 = vpop.f32.mrb[0].mxu0
    %204 = vdwg.mxu0
    %205 = vst [vmem:[#allocation2] sm:$0xf] %v202
    // Predicated region
    $region22: #{tpu_custom_call.1} parent=1 // pred_check
      _
    $region23: #{tpu_custom_call.1} parent=1 // pred_check_branch
      %207 = sbr.rel (0) target = $region25
    $region24: #{tpu_custom_call.1} parent=1 // pred_region
      %s209 = ssub.s32 64, 64
      %210 = vsyncadd [#allocation3], %s209
      %s212 = sshll.u32 [#allocation2], 4
      %s213 = int_to_ptr.vmem [resolvable:$true] %s212
      %215 = dma.vmem_to_hbm [thread:$0]  %s213, 64, %s5, [#allocation3]
    $region25: #{tpu_custom_call.1} parent=1 // pred_fallthru
      _
    // Predicated region
    $region26: #{tpu_custom_call.1} parent=1 // pred_check
      _
    $region27: #{tpu_custom_call.1} parent=1 // pred_check_branch
      %217 = sbr.rel (0) target = $region29
    $region28: #{tpu_custom_call.1} parent=1 // pred_region
      %218 = dma.done [#allocation3], 64
    $region29: #{tpu_custom_call.1} parent=1 // pred_fallthru
      _
    %219 = vsyncpa [#allocation3], 1

</llo_original>
